<compile_context>
chip_gen: v7x
topology: tpu7x:2x2x1
jax: 0.10.0
libtpu: 0.0.40
codegen_flags: <defaults>
</compile_context>

<pallas_src>
import jax
import jax.numpy as jnp
import numpy as np
from jax import lax
from jax.experimental import pallas as pl
from jax.experimental.pallas import tpu as pltpu

LN_EPS = 1e-12  # BERT embeddings.LayerNorm eps


def _image_bert_embeddings_kernel(img_ref, w_ref, static_ref, ttid_ref,
                                  tt_emb_ref, gamma_ref, beta_ref, o_ref):
    """One grid step == ROWS = TB*SEQ flattened (batch, position) rows.

    img_ref   : (ROWS, IMG_HIDDEN) bf16  image feats, zero rows at CLS/SEP
    w_ref     : (IMG_HIDDEN, HIDDEN) bf16 nn.Linear weight (in, out)
    static_ref: (ROWS, HIDDEN) f32  cls/sep word emb + pos emb + folded bias
    ttid_ref  : (ROWS, 1) int32     token-type ids
    tt_emb_ref: (N_TYPES, HIDDEN) f32 token-type embedding table
    gamma_ref : (1, HIDDEN) f32     LayerNorm weight
    beta_ref  : (1, HIDDEN) f32     LayerNorm bias
    o_ref     : (ROWS, HIDDEN) bf16 output
    """
    hidden = o_ref.shape[-1]
    n_types = tt_emb_ref.shape[0]

    # Image projection: lane/sublane-dense bf16 MXU matmul, f32 accumulation.
    x = jnp.dot(img_ref[...], w_ref[...], preferred_element_type=jnp.float32)

    # Token-type embeddings: VPU select against the tiny table (no K=2 MXU
    # push, no (B, SEQ, N_TYPES) HBM stream). n_types is static and tiny.
    ids = ttid_ref[...]                      # (ROWS, 1) int32
    tt_tab = tt_emb_ref[...]                 # (N_TYPES, HIDDEN) f32
    for t in range(n_types):
        x = x + (ids == t).astype(jnp.float32) * tt_tab[t:t + 1, :]

    # Batch-invariant rows: cls/sep word emb + position emb + linear bias
    # (bias folded only into image rows).
    x = x + static_ref[...]

    # Fused single-pass LayerNorm (f32); clamp var against E[x^2]-mean^2
    # cancellation so rsqrt cannot see a negative argument.
    h_inv = 1.0 / hidden
    mean = jnp.sum(x, axis=-1, keepdims=True) * h_inv
    ex2 = jnp.sum(x * x, axis=-1, keepdims=True) * h_inv
    var = jnp.maximum(ex2 - mean * mean, 0.0)
    y = (x - mean) * lax.rsqrt(var + LN_EPS)
    y = y * gamma_ref[...] + beta_ref[...]

    # TODO(synk): nn.Dropout omitted (eval-mode identity); train-mode masking
    # would use pltpu.prng_seed / pltpu.prng_random_bits.
    o_ref[...] = y.astype(o_ref.dtype)


def _pick_batch_tile(bsz, seq, img_hidden, hidden, *, img_bytes=2, out_bytes=2,
                     static_bytes=4, vmem_budget_bytes=32 << 20, min_steps=1):
    """Largest divisor TB of bsz whose per-step working set fits the budget.

    Per-step VMEM for ROWS = TB*seq:
      2*ROWS*IMG_HIDDEN*img_bytes  (double-buffered bf16 image stream)
      2*ROWS*128*4                 (lane-padded int32 token-type ids)
      2*ROWS*HIDDEN*out_bytes      (double-buffered bf16 output)
      ROWS*HIDDEN*static_bytes     (resident batch-invariant add rows)
    min_steps=1 on single-TC v5e/v6e (extra steps are pure overhead);
    pass min_steps=2 on v7x so both TensorCores get work.
    """
    def step_bytes(tb):
        rows = tb * seq
        return rows * (2 * img_hidden * img_bytes + 2 * 128 * 4
                       + 2 * hidden * out_bytes + hidden * static_bytes)

    divisors = [d for d in range(1, bsz + 1) if bsz % d == 0]
    aligned = [d for d in divisors if (d * seq) % 8 == 0 or d == bsz]
    ok = [d for d in aligned
          if step_bytes(d) <= vmem_budget_bytes and bsz // d >= min_steps]
    if ok:
        return max(ok)
    return min(aligned) if aligned else 1


def image_bert_embeddings_pallas(padded2d, static_add, ttids2d, params, *, seq,
                                 out_dtype=jnp.bfloat16, batch_tile=None,
                                 min_grid_steps=1, single_buffer_constants=True):
    rows_total, img_hidden = padded2d.shape
    bsz = rows_total // seq
    hidden = params["lin_w"].shape[1]
    n_types = params["tt_emb"].shape[0]

    tb = batch_tile if batch_tile is not None else _pick_batch_tile(
        bsz, seq, img_hidden, hidden, min_steps=min_grid_steps)
    assert bsz % tb == 0, "batch tile must divide batch size"
    rows = tb * seq
    grid = (bsz // tb,)

    # Batch-invariant additive rows, pre-tiled to the block's row count so the
    # kernel needs no broadcast/reshape; resident across the whole grid.
    static_tiled = jnp.tile(static_add.astype(jnp.float32), (tb, 1))

    lin_w = params["lin_w"].astype(padded2d.dtype)      # bf16 weight
    tt_emb = params["tt_emb"].astype(jnp.float32)       # tiny, keep f32
    gamma = params["ln_gamma"].astype(jnp.float32)
    beta = params["ln_beta"].astype(jnp.float32)

    # Explicit scoped-VMEM limit with headroom (v5e default is only 16 MiB;
    # v7x physical is 64 MiB, so stay well below that).
    est_bytes = (rows * (2 * img_hidden * 2 + 2 * 128 * 4 + 2 * hidden * 2
                         + hidden * 4)
                 + 2 * img_hidden * hidden * 2
                 + 4 * 8 * hidden * 4)
    vmem_limit = int(min(max(2 * est_bytes, 8 << 20), 48 << 20))

    def build(single_buffer):
        pmode = {"pipeline_mode": pl.Buffered(1)} if single_buffer else {}

        def const_spec(shape):
            return pl.BlockSpec(shape, lambda bi: (0, 0), **pmode)

        return pl.pallas_call(
            _image_bert_embeddings_kernel,
            out_shape=jax.ShapeDtypeStruct((rows_total, hidden), out_dtype),
            grid_spec=pltpu.PrefetchScalarGridSpec(
                num_scalar_prefetch=0,
                grid=grid,
                in_specs=[
                    pl.BlockSpec((rows, img_hidden), lambda bi: (bi, 0)),
                    const_spec((img_hidden, hidden)),
                    const_spec((rows, hidden)),
                    pl.BlockSpec((rows, 1), lambda bi: (bi, 0)),
                    const_spec((n_types, hidden)),
                    const_spec((1, hidden)),
                    const_spec((1, hidden)),
                ],
                out_specs=pl.BlockSpec((rows, hidden), lambda bi: (bi, 0)),
            ),
            compiler_params=pltpu.CompilerParams(
                dimension_semantics=("parallel",),
                vmem_limit_bytes=vmem_limit),
        )

    args = (padded2d, lin_w, static_tiled, ttids2d, tt_emb, gamma, beta)
    modes = (True, False) if single_buffer_constants else (False,)
    last_err = None
    for sb in modes:
        try:
            out = build(sb)(*args)
            jax.block_until_ready(out)
            return out
        except Exception as e:  # fallback if this JAX build rejects Buffered(1)
            last_err = e
    raise last_err


def image_bert_embeddings(input_imgs, token_type_ids, params, cls_id, sep_id,
                          out_dtype=jnp.bfloat16, batch_tile=None,
                          min_grid_steps=1):
    """Full forward: tiny batch-invariant glue in JAX, hot path in Pallas."""
    bsz, n_img, img_hidden = input_imgs.shape
    seq = n_img + 2
    hidden = params["word_emb"].shape[1]

    # bf16 image stream pre-padded with zero rows at [CLS]/[SEP] positions,
    # flattened to a 2-D lane/sublane-dense MXU operand (no in-kernel concat
    # or reshape).
    padded = jnp.zeros((bsz, seq, img_hidden), jnp.bfloat16)
    padded = padded.at[:, 1:seq - 1, :].set(input_imgs.astype(jnp.bfloat16))
    padded2d = padded.reshape(bsz * seq, img_hidden)

    # Batch-invariant additive rows (f32, tiny): cls/sep word embeds + position
    # embeds + linear bias folded ONLY into image rows.
    word_rows = jnp.zeros((seq, hidden), jnp.float32)
    word_rows = word_rows.at[0].set(params["word_emb"][cls_id].astype(jnp.float32))
    word_rows = word_rows.at[seq - 1].set(params["word_emb"][sep_id].astype(jnp.float32))
    bias_rows = jnp.zeros((seq, hidden), jnp.float32)
    bias_rows = bias_rows.at[1:seq - 1].set(
        params["lin_b"].reshape(hidden).astype(jnp.float32))
    static_add = word_rows + params["pos_emb"][:seq].astype(jnp.float32) + bias_rows

    # Token-type ids as a flattened int32 column (gathered in-kernel via a VPU
    # select against the (N_TYPES, HIDDEN) table).
    ttids2d = token_type_ids.astype(jnp.int32).reshape(bsz * seq, 1)

    out2d = image_bert_embeddings_pallas(
        padded2d, static_add, ttids2d, params, seq=seq, out_dtype=out_dtype,
        batch_tile=batch_tile, min_grid_steps=min_grid_steps)
    return out2d.reshape(bsz, seq, hidden)


def _reference(input_imgs, token_type_ids, params, cls_id, sep_id):
    bsz, n_img, _ = input_imgs.shape
    seq = n_img + 2
    hidden = params["word_emb"].shape[1]
    cls = jnp.broadcast_to(params["word_emb"][cls_id][None, None, :],
                           (bsz, 1, hidden))
    sep = jnp.broadcast_to(params["word_emb"][sep_id][None, None, :],
                           (bsz, 1, hidden))
    imgs = jnp.einsum("bnd,dh->bnh", input_imgs, params["lin_w"]) + params["lin_b"][0]
    tok = jnp.concatenate([cls, imgs, sep], axis=1)
    pos = params["pos_emb"][:seq][None]
    tt = jnp.take(params["tt_emb"], token_type_ids, axis=0)
    x = tok + pos + tt
    mean = jnp.mean(x, axis=-1, keepdims=True)
    var = jnp.mean((x - mean) ** 2, axis=-1, keepdims=True)
    y = (x - mean) / jnp.sqrt(var + LN_EPS)
    return y * params["ln_gamma"][0] + params["ln_beta"][0]


if __name__ == "__main__":
    # Small, deterministic config.
    BSZ = 4
    NUM_IMAGE_EMBEDS = 6
    SEQ = NUM_IMAGE_EMBEDS + 2          # 8
    IMG_HIDDEN = 128                    # args.img_hidden_sz
    HIDDEN = 128                        # args.hidden_sz
    VOCAB = 32
    MAX_POS = 64
    N_TOKEN_TYPES = 2
    CLS_ID, SEP_ID = 1, 2               # args.vocab.stoi['[CLS]'], ['[SEP]']

    key = jax.random.PRNGKey(0)
    ks = jax.random.split(key, 9)

    params = {
        # nn.Linear(img_hidden_sz, hidden_sz): weight stored as (in, out)
        "lin_w": jax.random.normal(ks[0], (IMG_HIDDEN, HIDDEN), jnp.float32) * 0.02,
        "lin_b": jax.random.normal(ks[1], (1, HIDDEN), jnp.float32) * 0.02,
        "word_emb": jax.random.normal(ks[2], (VOCAB, HIDDEN), jnp.float32) * 0.02,
        "pos_emb": jax.random.normal(ks[3], (MAX_POS, HIDDEN), jnp.float32) * 0.02,
        "tt_emb": jax.random.normal(ks[4], (N_TOKEN_TYPES, HIDDEN), jnp.float32) * 0.02,
        "ln_gamma": 1.0 + 0.1 * jax.random.normal(ks[7], (1, HIDDEN), jnp.float32),
        "ln_beta": 0.02 * jax.random.normal(ks[8], (1, HIDDEN), jnp.float32),
    }

    input_imgs = jax.random.normal(ks[5], (BSZ, NUM_IMAGE_EMBEDS, IMG_HIDDEN),
                                   jnp.float32)
    token_type_ids = jax.random.randint(ks[6], (BSZ, SEQ), 0, N_TOKEN_TYPES)

    out = image_bert_embeddings(input_imgs, token_type_ids, params,
                                CLS_ID, SEP_ID)
    out = jax.block_until_ready(out)

    ref = _reference(input_imgs, token_type_ids, params, CLS_ID, SEP_ID)
    assert out.shape == (BSZ, SEQ, HIDDEN)
    assert out.dtype == jnp.bfloat16
    # bf16 streams + bf16 output vs f32 reference -> loosened tolerance.
    assert np.allclose(np.asarray(out, dtype=np.float32), np.asarray(ref),
                       atol=5e-2, rtol=5e-2)
    print("KERNEL_OK")
</pallas_src>

<mosaic_0001>
module attributes {stable_mosaic.version = 11 : i64} {
  func.func @_image_bert_embeddings_kernel(%arg0: i32, %arg1: memref<32x128xbf16, #tpu.memory_space<vmem>>, %arg2: memref<128x128xbf16, #tpu.memory_space<vmem>>, %arg3: memref<32x128xf32, #tpu.memory_space<vmem>>, %arg4: memref<32x1xi32, #tpu.memory_space<vmem>>, %arg5: memref<2x128xf32, #tpu.memory_space<vmem>>, %arg6: memref<1x128xf32, #tpu.memory_space<vmem>>, %arg7: memref<1x128xf32, #tpu.memory_space<vmem>>, %arg8: memref<32x128xbf16, #tpu.memory_space<vmem>>) attributes {dimension_semantics = [#tpu.dimension_semantics<parallel>], iteration_bounds = array<i64: 1>, scalar_prefetch = 0 : i64, scratch_operands = 0 : i64, tpu.core_type = #tpu.core_type<tc>, window_params = [{transform_indices = @transform_0, window_bounds = array<i64: 32, 128>}, {pipeline_mode = #tpu.pipeline_mode<synchronous>, transform_indices = @transform_1, window_bounds = array<i64: 128, 128>}, {pipeline_mode = #tpu.pipeline_mode<synchronous>, transform_indices = @transform_2, window_bounds = array<i64: 32, 128>}, {transform_indices = @transform_3, window_bounds = array<i64: 32, 1>}, {pipeline_mode = #tpu.pipeline_mode<synchronous>, transform_indices = @transform_4, window_bounds = array<i64: 2, 128>}, {pipeline_mode = #tpu.pipeline_mode<synchronous>, transform_indices = @transform_5, window_bounds = array<i64: 1, 128>}, {pipeline_mode = #tpu.pipeline_mode<synchronous>, transform_indices = @transform_6, window_bounds = array<i64: 1, 128>}, {transform_indices = @transform_7, window_bounds = array<i64: 32, 128>}]} {
    %c0 = arith.constant 0 : index
    %c0_0 = arith.constant 0 : index
    %0 = vector.load %arg1[%c0, %c0_0] : memref<32x128xbf16, #tpu.memory_space<vmem>>, vector<32x128xbf16>
    %c0_1 = arith.constant 0 : index
    %c0_2 = arith.constant 0 : index
    %1 = vector.load %arg2[%c0_1, %c0_2] : memref<128x128xbf16, #tpu.memory_space<vmem>>, vector<128x128xbf16>
    %cst = arith.constant dense<0.000000e+00> : vector<32x128xf32>
    %2 = tpu.matmul %0, %1, %cst {dimension_numbers = #tpu.dot_dimension_numbers<[1], [0], [0], [1], [0, 0, 1, 1], [], []>} : vector<32x128xbf16>, vector<128x128xbf16>, vector<32x128xf32> -> vector<32x128xf32>
    %c0_3 = arith.constant 0 : index
    %c0_4 = arith.constant 0 : index
    %3 = vector.load %arg4[%c0_3, %c0_4] : memref<32x1xi32, #tpu.memory_space<vmem>>, vector<32x1xi32>
    %c0_5 = arith.constant 0 : index
    %c0_6 = arith.constant 0 : index
    %4 = vector.load %arg5[%c0_5, %c0_6] : memref<2x128xf32, #tpu.memory_space<vmem>>, vector<2x128xf32>
    %c0_i32 = arith.constant 0 : i32
    %5 = vector.broadcast %c0_i32 : i32 to vector<32x1xi32>
    %6 = arith.cmpi eq, %3, %5 : vector<32x1xi32>
    %7 = arith.extui %6 : vector<32x1xi1> to vector<32x1xi32>
    %8 = arith.sitofp %7 : vector<32x1xi32> to vector<32x1xf32>
    %9 = vector.extract_strided_slice %4 {offsets = [0, 0], sizes = [1, 128], strides = [1, 1]} : vector<2x128xf32> to vector<1x128xf32>
    %10 = vector.broadcast %8 : vector<32x1xf32> to vector<32x128xf32>
    %11 = vector.broadcast %9 : vector<1x128xf32> to vector<32x128xf32>
    %12 = arith.mulf %10, %11 : vector<32x128xf32>
    %13 = arith.addf %2, %12 : vector<32x128xf32>
    %c1_i32 = arith.constant 1 : i32
    %14 = vector.broadcast %c1_i32 : i32 to vector<32x1xi32>
    %15 = arith.cmpi eq, %3, %14 : vector<32x1xi32>
    %16 = arith.extui %15 : vector<32x1xi1> to vector<32x1xi32>
    %17 = arith.sitofp %16 : vector<32x1xi32> to vector<32x1xf32>
    %18 = vector.extract_strided_slice %4 {offsets = [1, 0], sizes = [1, 128], strides = [1, 1]} : vector<2x128xf32> to vector<1x128xf32>
    %19 = vector.broadcast %17 : vector<32x1xf32> to vector<32x128xf32>
    %20 = vector.broadcast %18 : vector<1x128xf32> to vector<32x128xf32>
    %21 = arith.mulf %19, %20 : vector<32x128xf32>
    %22 = arith.addf %13, %21 : vector<32x128xf32>
    %c0_7 = arith.constant 0 : index
    %c0_8 = arith.constant 0 : index
    %23 = vector.load %arg3[%c0_7, %c0_8] : memref<32x128xf32, #tpu.memory_space<vmem>>, vector<32x128xf32>
    %24 = arith.addf %22, %23 : vector<32x128xf32>
    %cst_9 = arith.constant dense<0.000000e+00> : vector<32xf32>
    %25 = vector.multi_reduction <add>, %24, %cst_9 [1] : vector<32x128xf32> to vector<32xf32>
    %26 = vector.shape_cast %25 : vector<32xf32> to vector<32x1xf32>
    %cst_10 = arith.constant 7.812500e-03 : f32
    %27 = vector.broadcast %cst_10 : f32 to vector<32x1xf32>
    %28 = arith.mulf %26, %27 : vector<32x1xf32>
    %29 = arith.mulf %24, %24 : vector<32x128xf32>
    %cst_11 = arith.constant dense<0.000000e+00> : vector<32xf32>
    %30 = vector.multi_reduction <add>, %29, %cst_11 [1] : vector<32x128xf32> to vector<32xf32>
    %31 = vector.shape_cast %30 : vector<32xf32> to vector<32x1xf32>
    %cst_12 = arith.constant 7.812500e-03 : f32
    %32 = vector.broadcast %cst_12 : f32 to vector<32x1xf32>
    %33 = arith.mulf %31, %32 : vector<32x1xf32>
    %34 = arith.mulf %28, %28 : vector<32x1xf32>
    %35 = arith.subf %33, %34 : vector<32x1xf32>
    %cst_13 = arith.constant 0.000000e+00 : f32
    %36 = vector.broadcast %cst_13 : f32 to vector<32x1xf32>
    %37 = arith.maximumf %35, %36 : vector<32x1xf32>
    %38 = vector.broadcast %28 : vector<32x1xf32> to vector<32x128xf32>
    %39 = arith.subf %24, %38 : vector<32x128xf32>
    %cst_14 = arith.constant 9.99999996E-13 : f32
    %40 = vector.broadcast %cst_14 : f32 to vector<32x1xf32>
    %41 = arith.addf %37, %40 : vector<32x1xf32>
    %42 = math.rsqrt %41 : vector<32x1xf32>
    %43 = vector.broadcast %42 : vector<32x1xf32> to vector<32x128xf32>
    %44 = arith.mulf %39, %43 : vector<32x128xf32>
    %c0_15 = arith.constant 0 : index
    %c0_16 = arith.constant 0 : index
    %45 = vector.load %arg6[%c0_15, %c0_16] : memref<1x128xf32, #tpu.memory_space<vmem>>, vector<1x128xf32>
    %46 = vector.broadcast %45 : vector<1x128xf32> to vector<32x128xf32>
    %47 = arith.mulf %44, %46 : vector<32x128xf32>
    %c0_17 = arith.constant 0 : index
    %c0_18 = arith.constant 0 : index
    %48 = vector.load %arg7[%c0_17, %c0_18] : memref<1x128xf32, #tpu.memory_space<vmem>>, vector<1x128xf32>
    %49 = vector.broadcast %48 : vector<1x128xf32> to vector<32x128xf32>
    %50 = arith.addf %47, %49 : vector<32x128xf32>
    %51 = arith.truncf %50 : vector<32x128xf32> to vector<32x128xbf16>
    %c0_19 = arith.constant 0 : index
    %c0_20 = arith.constant 0 : index
    %52 = vector.load %arg8[%c0_19, %c0_20] : memref<32x128xbf16, #tpu.memory_space<vmem>>, vector<32x128xbf16>
    tpu.vector_store %arg8[%c0_19, %c0_20], %51 {strides = array<i32>} : memref<32x128xbf16, #tpu.memory_space<vmem>>, vector<32x128xbf16>,
    return
  }
  func.func @transform_0(%arg0: i32) -> (i32, i32) {
    %c0_i32 = arith.constant 0 : i32
    %c0_i32_0 = arith.constant 0 : i32
    return %arg0, %c0_i32 : i32, i32
  }
  func.func @transform_1(%arg0: i32) -> (i32, i32) {
    %c0_i32 = arith.constant 0 : i32
    %c0_i32_0 = arith.constant 0 : i32
    %c0_i32_1 = arith.constant 0 : i32
    return %c0_i32, %c0_i32_0 : i32, i32
  }
  func.func @transform_2(%arg0: i32) -> (i32, i32) {
    %c0_i32 = arith.constant 0 : i32
    %c0_i32_0 = arith.constant 0 : i32
    %c0_i32_1 = arith.constant 0 : i32
    return %c0_i32, %c0_i32_0 : i32, i32
  }
  func.func @transform_3(%arg0: i32) -> (i32, i32) {
    %c0_i32 = arith.constant 0 : i32
    %c0_i32_0 = arith.constant 0 : i32
    return %arg0, %c0_i32 : i32, i32
  }
  func.func @transform_4(%arg0: i32) -> (i32, i32) {
    %c0_i32 = arith.constant 0 : i32
    %c0_i32_0 = arith.constant 0 : i32
    %c0_i32_1 = arith.constant 0 : i32
    return %c0_i32, %c0_i32_0 : i32, i32
  }
  func.func @transform_5(%arg0: i32) -> (i32, i32) {
    %c0_i32 = arith.constant 0 : i32
    %c0_i32_0 = arith.constant 0 : i32
    %c0_i32_1 = arith.constant 0 : i32
    return %c0_i32, %c0_i32_0 : i32, i32
  }
  func.func @transform_6(%arg0: i32) -> (i32, i32) {
    %c0_i32 = arith.constant 0 : i32
    %c0_i32_0 = arith.constant 0 : i32
    %c0_i32_1 = arith.constant 0 : i32
    return %c0_i32, %c0_i32_0 : i32, i32
  }
  func.func @transform_7(%arg0: i32) -> (i32, i32) {
    %c0_i32 = arith.constant 0 : i32
    %c0_i32_0 = arith.constant 0 : i32
    return %arg0, %c0_i32 : i32, i32
  }
}

module attributes {stable_mosaic.version = 11 : i64} {
  func.func @_image_bert_embeddings_kernel(%arg0: i32, %arg1: memref<32x128xbf16, #tpu.memory_space<vmem>>, %arg2: memref<128x128xbf16, #tpu.memory_space<vmem>>, %arg3: memref<32x128xf32, #tpu.memory_space<vmem>>, %arg4: memref<32x1xi32, #tpu.memory_space<vmem>>, %arg5: memref<2x128xf32, #tpu.memory_space<vmem>>, %arg6: memref<1x128xf32, #tpu.memory_space<vmem>>, %arg7: memref<1x128xf32, #tpu.memory_space<vmem>>, %arg8: memref<32x128xbf16, #tpu.memory_space<vmem>>) attributes {dimension_semantics = [#tpu.dimension_semantics<parallel>], iteration_bounds = array<i64: 1>, scalar_prefetch = 0 : i64, scratch_operands = 0 : i64, tpu.core_type = #tpu.core_type<tc>, window_params = [{transform_indices = @transform_0, window_bounds = array<i64: 32, 128>}, {pipeline_mode = #tpu.pipeline_mode<synchronous>, transform_indices = @transform_1, window_bounds = array<i64: 128, 128>}, {pipeline_mode = #tpu.pipeline_mode<synchronous>, transform_indices = @transform_2, window_bounds = array<i64: 32, 128>}, {transform_indices = @transform_3, window_bounds = array<i64: 32, 1>}, {pipeline_mode = #tpu.pipeline_mode<synchronous>, transform_indices = @transform_4, window_bounds = array<i64: 2, 128>}, {pipeline_mode = #tpu.pipeline_mode<synchronous>, transform_indices = @transform_5, window_bounds = array<i64: 1, 128>}, {pipeline_mode = #tpu.pipeline_mode<synchronous>, transform_indices = @transform_6, window_bounds = array<i64: 1, 128>}, {transform_indices = @transform_7, window_bounds = array<i64: 32, 128>}]} {
    %c0 = arith.constant 0 : index
    %c0_0 = arith.constant 0 : index
    %0 = vector.load %arg1[%c0, %c0_0] : memref<32x128xbf16, #tpu.memory_space<vmem>>, vector<32x128xbf16>
    %c0_1 = arith.constant 0 : index
    %c0_2 = arith.constant 0 : index
    %1 = vector.load %arg2[%c0_1, %c0_2] : memref<128x128xbf16, #tpu.memory_space<vmem>>, vector<128x128xbf16>
    %cst = arith.constant dense<0.000000e+00> : vector<32x128xf32>
    %2 = tpu.matmul %0, %1, %cst {dimension_numbers = #tpu.dot_dimension_numbers<[1], [0], [0], [1], [0, 0, 1, 1], [], []>} : vector<32x128xbf16>, vector<128x128xbf16>, vector<32x128xf32> -> vector<32x128xf32>
    %c0_3 = arith.constant 0 : index
    %c0_4 = arith.constant 0 : index
    %3 = vector.load %arg4[%c0_3, %c0_4] : memref<32x1xi32, #tpu.memory_space<vmem>>, vector<32x1xi32>
    %c0_5 = arith.constant 0 : index
    %c0_6 = arith.constant 0 : index
    %4 = vector.load %arg5[%c0_5, %c0_6] : memref<2x128xf32, #tpu.memory_space<vmem>>, vector<2x128xf32>
    %c0_i32 = arith.constant 0 : i32
    %5 = vector.broadcast %c0_i32 : i32 to vector<32x1xi32>
    %6 = arith.cmpi eq, %3, %5 : vector<32x1xi32>
    %7 = arith.extui %6 : vector<32x1xi1> to vector<32x1xi32>
    %8 = arith.sitofp %7 : vector<32x1xi32> to vector<32x1xf32>
    %9 = vector.extract_strided_slice %4 {offsets = [0, 0], sizes = [1, 128], strides = [1, 1]} : vector<2x128xf32> to vector<1x128xf32>
    %10 = vector.broadcast %8 : vector<32x1xf32> to vector<32x128xf32>
    %11 = vector.broadcast %9 : vector<1x128xf32> to vector<32x128xf32>
    %12 = arith.mulf %10, %11 : vector<32x128xf32>
    %13 = arith.addf %2, %12 : vector<32x128xf32>
    %c1_i32 = arith.constant 1 : i32
    %14 = vector.broadcast %c1_i32 : i32 to vector<32x1xi32>
    %15 = arith.cmpi eq, %3, %14 : vector<32x1xi32>
    %16 = arith.extui %15 : vector<32x1xi1> to vector<32x1xi32>
    %17 = arith.sitofp %16 : vector<32x1xi32> to vector<32x1xf32>
    %18 = vector.extract_strided_slice %4 {offsets = [1, 0], sizes = [1, 128], strides = [1, 1]} : vector<2x128xf32> to vector<1x128xf32>
    %19 = vector.broadcast %17 : vector<32x1xf32> to vector<32x128xf32>
    %20 = vector.broadcast %18 : vector<1x128xf32> to vector<32x128xf32>
    %21 = arith.mulf %19, %20 : vector<32x128xf32>
    %22 = arith.addf %13, %21 : vector<32x128xf32>
    %c0_7 = arith.constant 0 : index
    %c0_8 = arith.constant 0 : index
    %23 = vector.load %arg3[%c0_7, %c0_8] : memref<32x128xf32, #tpu.memory_space<vmem>>, vector<32x128xf32>
    %24 = arith.addf %22, %23 : vector<32x128xf32>
    %cst_9 = arith.constant dense<0.000000e+00> : vector<32xf32>
    %25 = vector.multi_reduction <add>, %24, %cst_9 [1] : vector<32x128xf32> to vector<32xf32>
    %26 = vector.shape_cast %25 : vector<32xf32> to vector<32x1xf32>
    %cst_10 = arith.constant 7.812500e-03 : f32
    %27 = vector.broadcast %cst_10 : f32 to vector<32x1xf32>
    %28 = arith.mulf %26, %27 : vector<32x1xf32>
    %29 = arith.mulf %24, %24 : vector<32x128xf32>
    %cst_11 = arith.constant dense<0.000000e+00> : vector<32xf32>
    %30 = vector.multi_reduction <add>, %29, %cst_11 [1] : vector<32x128xf32> to vector<32xf32>
    %31 = vector.shape_cast %30 : vector<32xf32> to vector<32x1xf32>
    %cst_12 = arith.constant 7.812500e-03 : f32
    %32 = vector.broadcast %cst_12 : f32 to vector<32x1xf32>
    %33 = arith.mulf %31, %32 : vector<32x1xf32>
    %34 = arith.mulf %28, %28 : vector<32x1xf32>
    %35 = arith.subf %33, %34 : vector<32x1xf32>
    %cst_13 = arith.constant 0.000000e+00 : f32
    %36 = vector.broadcast %cst_13 : f32 to vector<32x1xf32>
    %37 = arith.maximumf %35, %36 : vector<32x1xf32>
    %38 = vector.broadcast %28 : vector<32x1xf32> to vector<32x128xf32>
    %39 = arith.subf %24, %38 : vector<32x128xf32>
    %cst_14 = arith.constant 9.99999996E-13 : f32
    %40 = vector.broadcast %cst_14 : f32 to vector<32x1xf32>
    %41 = arith.addf %37, %40 : vector<32x1xf32>
    %42 = math.rsqrt %41 : vector<32x1xf32>
    %43 = vector.broadcast %42 : vector<32x1xf32> to vector<32x128xf32>
    %44 = arith.mulf %39, %43 : vector<32x128xf32>
    %c0_15 = arith.constant 0 : index
    %c0_16 = arith.constant 0 : index
    %45 = vector.load %arg6[%c0_15, %c0_16] : memref<1x128xf32, #tpu.memory_space<vmem>>, vector<1x128xf32>
    %46 = vector.broadcast %45 : vector<1x128xf32> to vector<32x128xf32>
    %47 = arith.mulf %44, %46 : vector<32x128xf32>
    %c0_17 = arith.constant 0 : index
    %c0_18 = arith.constant 0 : index
    %48 = vector.load %arg7[%c0_17, %c0_18] : memref<1x128xf32, #tpu.memory_space<vmem>>, vector<1x128xf32>
    %49 = vector.broadcast %48 : vector<1x128xf32> to vector<32x128xf32>
    %50 = arith.addf %47, %49 : vector<32x128xf32>
    %51 = arith.truncf %50 : vector<32x128xf32> to vector<32x128xbf16>
    %c0_19 = arith.constant 0 : index
    %c0_20 = arith.constant 0 : index
    %52 = vector.load %arg8[%c0_19, %c0_20] : memref<32x128xbf16, #tpu.memory_space<vmem>>, vector<32x128xbf16>
    tpu.vector_store %arg8[%c0_19, %c0_20], %51 {strides = array<i32>} : memref<32x128xbf16, #tpu.memory_space<vmem>>, vector<32x128xbf16>,
    return
  }
  func.func @transform_0(%arg0: i32) -> (i32, i32) {
    %c0_i32 = arith.constant 0 : i32
    %c0_i32_0 = arith.constant 0 : i32
    return %arg0, %c0_i32 : i32, i32
  }
  func.func @transform_1(%arg0: i32) -> (i32, i32) {
    %c0_i32 = arith.constant 0 : i32
    %c0_i32_0 = arith.constant 0 : i32
    %c0_i32_1 = arith.constant 0 : i32
    return %c0_i32, %c0_i32_0 : i32, i32
  }
  func.func @transform_2(%arg0: i32) -> (i32, i32) {
    %c0_i32 = arith.constant 0 : i32
    %c0_i32_0 = arith.constant 0 : i32
    %c0_i32_1 = arith.constant 0 : i32
    return %c0_i32, %c0_i32_0 : i32, i32
  }
  func.func @transform_3(%arg0: i32) -> (i32, i32) {
    %c0_i32 = arith.constant 0 : i32
    %c0_i32_0 = arith.constant 0 : i32
    return %arg0, %c0_i32 : i32, i32
  }
  func.func @transform_4(%arg0: i32) -> (i32, i32) {
    %c0_i32 = arith.constant 0 : i32
    %c0_i32_0 = arith.constant 0 : i32
    %c0_i32_1 = arith.constant 0 : i32
    return %c0_i32, %c0_i32_0 : i32, i32
  }
  func.func @transform_5(%arg0: i32) -> (i32, i32) {
    %c0_i32 = arith.constant 0 : i32
    %c0_i32_0 = arith.constant 0 : i32
    %c0_i32_1 = arith.constant 0 : i32
    return %c0_i32, %c0_i32_0 : i32, i32
  }
  func.func @transform_6(%arg0: i32) -> (i32, i32) {
    %c0_i32 = arith.constant 0 : i32
    %c0_i32_0 = arith.constant 0 : i32
    %c0_i32_1 = arith.constant 0 : i32
    return %c0_i32, %c0_i32_0 : i32, i32
  }
  func.func @transform_7(%arg0: i32) -> (i32, i32) {
    %c0_i32 = arith.constant 0 : i32
    %c0_i32_0 = arith.constant 0 : i32
    return %arg0, %c0_i32 : i32, i32
  }
}

</mosaic_0001>

<llo_original>
// kernel: tpu_custom_call.1
$region0: #{tpu_custom_call.1}
  #allocation0 [shape = 'u32[]', space=smem, size = 0x4, offset = 0x4, fixed_abs, tag = 'smem constant byte address 0x4 - core index']
  #allocation1 [shape = 'u32[144,128]{1,0:T(1,128)}', space=vmem, size = 0x12000, scoped, tag = 'internal scratch']
  %s0 = inlined_call_operand.hbm [shape: bf16[32,128], index: 0, kind: input, shape index: {}]
  %s1 = inlined_call_operand.hbm [shape: bf16[128,128], index: 1, kind: input, shape index: {}]
  %s2 = inlined_call_operand.vmem [shape: f32[32,128], index: 2, kind: input, shape index: {}]
  %s3 = inlined_call_operand.vmem [shape: s32[32,1], index: 3, kind: input, shape index: {}]
  %s4 = inlined_call_operand.vmem [shape: f32[2,128], index: 4, kind: input, shape index: {}]
  %s5 = inlined_call_operand.vmem [shape: f32[1,128], index: 5, kind: input, shape index: {}]
  %s6 = inlined_call_operand.vmem [shape: f32[1,128], index: 6, kind: input, shape index: {}]
  %s7 = inlined_call_operand.hbm [shape: bf16[32,128], index: 7, kind: output, shape index: {}]
  %s8 = sld [smem:[#allocation0]]
  $region46: #{tpu_custom_call.1} parent=0
    _
  %s10 = ssub.s32 1, %s8
  %s11 = scalar_select 0, %s10, %s8
  $region1: #{tpu_custom_call.1} parent=0
    #allocation2 [shape = 'u8[8192]{0}', space=vmem, size = 0x2000, scoped, tag = 'input window, operand 0, single buffered']
    #allocation3 [shape = 's32[1]{0}', space=sflag, size = 0x4, scoped, tag = 'scoped memory for tpu_custom_call.1']
    #allocation4 [shape = 's32[1]{0}', space=sflag, size = 0x4, scoped, tag = 'scoped memory for tpu_custom_call.1']
    #allocation5 [shape = 'u8[32768]{0}', space=vmem, size = 0x8000, scoped, tag = 'input window, operand 1, single buffered']
    #allocation6 [shape = 's32[1]{0}', space=sflag, size = 0x4, scoped, tag = 'scoped memory for tpu_custom_call.1']
    #allocation7 [shape = 'u8[8192]{0}', space=vmem, size = 0x2000, scoped, tag = 'output window, operand 0, single buffered']
    %12 = vsyncpa [#allocation3], 0
    %13 = vsyncpa [#allocation6], 0
    %14 = vsyncpa [#allocation4], 0
    // Predicated region
    $region2: #{tpu_custom_call.1} parent=1 // pred_check
      _
    $region3: #{tpu_custom_call.1} parent=1 // pred_check_branch
      %16 = sbr.rel (0) target = $region5
    $region4: #{tpu_custom_call.1} parent=1 // pred_region
      %s18 = ssub.s32 256, 256
      %19 = vsyncadd [#allocation3], %s18
      %s20 = sshll.u32 [#allocation2], 4
      %s21 = int_to_ptr.vmem [resolvable:$true] %s20
      %26 = dma.hbm_to_vmem [thread:$0]  %s0, 256, %s21, [#allocation3], 64, 64, 4
    $region5: #{tpu_custom_call.1} parent=1 // pred_fallthru
      _
    // Predicated region
    $region6: #{tpu_custom_call.1} parent=1 // pred_check
      _
    $region7: #{tpu_custom_call.1} parent=1 // pred_check_branch
      %28 = sbr.rel (0) target = $region9
    $region8: #{tpu_custom_call.1} parent=1 // pred_region
      %s30 = ssub.s32 1024, 1024
      %31 = vsyncadd [#allocation6], %s30
      %s32 = sshll.u32 [#allocation5], 4
      %s33 = int_to_ptr.vmem [resolvable:$true] %s32
      %38 = dma.hbm_to_vmem [thread:$0]  %s1, 1024, %s33, [#allocation6], 64, 64, 4
    $region9: #{tpu_custom_call.1} parent=1 // pred_fallthru
      _
    // Predicated region
    $region10: #{tpu_custom_call.1} parent=1 // pred_check
      _
    $region11: #{tpu_custom_call.1} parent=1 // pred_check_branch
      %40 = sbr.rel (0) target = $region13
    $region12: #{tpu_custom_call.1} parent=1 // pred_region
      _
    $region13: #{tpu_custom_call.1} parent=1 // pred_fallthru
      _
    // Predicated region
    $region14: #{tpu_custom_call.1} parent=1 // pred_check
      _
    $region15: #{tpu_custom_call.1} parent=1 // pred_check_branch
      %42 = sbr.rel (0) target = $region17
    $region16: #{tpu_custom_call.1} parent=1 // pred_region
      _
    $region17: #{tpu_custom_call.1} parent=1 // pred_fallthru
      _
    // Predicated region
    $region18: #{tpu_custom_call.1} parent=1 // pred_check
      _
    $region19: #{tpu_custom_call.1} parent=1 // pred_check_branch
      %44 = sbr.rel (0) target = $region21
    $region20: #{tpu_custom_call.1} parent=1 // pred_region
      _
    $region21: #{tpu_custom_call.1} parent=1 // pred_fallthru
      _
    // Predicated region
    $region22: #{tpu_custom_call.1} parent=1 // pred_check
      _
    $region23: #{tpu_custom_call.1} parent=1 // pred_check_branch
      %46 = sbr.rel (0) target = $region25
    $region24: #{tpu_custom_call.1} parent=1 // pred_region
      _
    $region25: #{tpu_custom_call.1} parent=1 // pred_fallthru
      _
    // Predicated region
    $region26: #{tpu_custom_call.1} parent=1 // pred_check
      _
    $region27: #{tpu_custom_call.1} parent=1 // pred_check_branch
      %48 = sbr.rel (0) target = $region29
    $region28: #{tpu_custom_call.1} parent=1 // pred_region
      _
    $region29: #{tpu_custom_call.1} parent=1 // pred_fallthru
      _
    // Predicated region
    $region30: #{tpu_custom_call.1} parent=1 // pred_check
      _
    $region31: #{tpu_custom_call.1} parent=1 // pred_check_branch
      %50 = sbr.rel (0) target = $region33
    $region32: #{tpu_custom_call.1} parent=1 // pred_region
      %51 = dma.done [#allocation3], 256
    $region33: #{tpu_custom_call.1} parent=1 // pred_fallthru
      _
    // Predicated region
    $region34: #{tpu_custom_call.1} parent=1 // pred_check
      _
    $region35: #{tpu_custom_call.1} parent=1 // pred_check_branch
      %53 = sbr.rel (0) target = $region37
    $region36: #{tpu_custom_call.1} parent=1 // pred_region
      %54 = dma.done [#allocation6], 1024
    $region37: #{tpu_custom_call.1} parent=1 // pred_fallthru
      _
    %v56 = vld [vmem:[#allocation2] sm:$0xf]
    %v57 = vld [vmem:[#allocation2 + $0x4] sm:$0xf]
    %v58 = vld [vmem:[#allocation2 + $0x8] sm:$0xf]
    %v59 = vld [vmem:[#allocation2 + $0xc] sm:$0xf]
    %v60 = vld [vmem:[#allocation5] sm:$0xf]
    %v61 = vld [vmem:[#allocation5 + $0x4] sm:$0xf]
    %v62 = vld [vmem:[#allocation5 + $0x8] sm:$0xf]
    %v63 = vld [vmem:[#allocation5 + $0xc] sm:$0xf]
    %v64 = vld [vmem:[#allocation5 + $0x10] sm:$0xf]
    %v65 = vld [vmem:[#allocation5 + $0x14] sm:$0xf]
    %v66 = vld [vmem:[#allocation5 + $0x18] sm:$0xf]
    %v67 = vld [vmem:[#allocation5 + $0x1c] sm:$0xf]
    %v68 = vld [vmem:[#allocation5 + $0x20] sm:$0xf]
    %v69 = vld [vmem:[#allocation5 + $0x24] sm:$0xf]
    %v70 = vld [vmem:[#allocation5 + $0x28] sm:$0xf]
    %v71 = vld [vmem:[#allocation5 + $0x2c] sm:$0xf]
    %v72 = vld [vmem:[#allocation5 + $0x30] sm:$0xf]
    %v73 = vld [vmem:[#allocation5 + $0x34] sm:$0xf]
    %v74 = vld [vmem:[#allocation5 + $0x38] sm:$0xf]
    %v75 = vld [vmem:[#allocation5 + $0x3c] sm:$0xf]
    %v76 = vld [vmem:[%s3] sm:$0xff]
    %v77 = vld [vmem:[%s3 + $0x8] sm:$0xff]
    %v78 = vld [vmem:[%s3 + $0x10] sm:$0xff]
    %v79 = vld [vmem:[%s3 + $0x18] sm:$0xff]
    %v80 = vld [vmem:[%s4] sm:$0x3]
    %vm81 = vcmp.eq.s32.totalorder %v76, 0
    %vm82 = vcmp.eq.s32.totalorder %v77, 0
    %vm83 = vcmp.eq.s32.totalorder %v78, 0
    %vm84 = vcmp.eq.s32.totalorder %v79, 0
    %v85 = vsel %vm81, 1, 0
    %v86 = vsel %vm82, 1, 0
    %v87 = vsel %vm83, 1, 0
    %v88 = vsel %vm84, 1, 0
    %v89 = vcvt.s32.f32 %v85
    %v90 = vcvt.s32.f32 %v86
    %v91 = vcvt.s32.f32 %v87
    %v92 = vcvt.s32.f32 %v88
    %94 = vset.pattern.permute.xlu0 0
    %95 = vperm.xlu0 %94, %v89
    %v96 = vpop.permute.xlu0 %95
    %99 = vset.pattern.permute.xlu0 0
    %100 = vperm.xlu0 %99, %v90
    %v101 = vpop.permute.xlu0 %100
    %104 = vset.pattern.permute.xlu0 0
    %105 = vperm.xlu0 %104, %v91
    %v106 = vpop.permute.xlu0 %105
    %109 = vset.pattern.permute.xlu0 0
    %110 = vperm.xlu0 %109, %v92
    %v111 = vpop.permute.xlu0 %110
    %v113 = vlaneseq
    %v114 = vshrl.u32 %v113, 7
    %v115 = vsub.s32 0, %v114
    %v116 = vrot.slane %v80, %v115
    %v117 = vmul.f32 %v96, %v116
    %v118 = vmul.f32 %v101, %v116
    %v119 = vmul.f32 %v106, %v116
    %v120 = vmul.f32 %v111, %v116
    %v125 = vunpack.c.l.b16 %v56
    %v126 = vunpack.c.l.b16 %v57
    %v127 = vunpack.c.l.b16 %v58
    %v128 = vunpack.c.l.b16 %v59
    %v129 = vpack.c.b16 %v126, %v125
    %v130 = vpack.c.b16 %v128, %v127
    %v149 = vunpack.c.l.b16 %v60
    %v150 = vunpack.c.l.b16 %v61
    %v151 = vunpack.c.l.b16 %v62
    %v152 = vunpack.c.l.b16 %v63
    %v153 = vunpack.c.l.b16 %v64
    %v154 = vunpack.c.l.b16 %v65
    %v155 = vunpack.c.l.b16 %v66
    %v156 = vunpack.c.l.b16 %v67
    %v157 = vunpack.c.l.b16 %v68
    %v158 = vunpack.c.l.b16 %v69
    %v159 = vunpack.c.l.b16 %v70
    %v160 = vunpack.c.l.b16 %v71
    %v161 = vunpack.c.l.b16 %v72
    %v162 = vunpack.c.l.b16 %v73
    %v163 = vunpack.c.l.b16 %v74
    %v164 = vunpack.c.l.b16 %v75
    %v165 = vpack.c.b16 %v150, %v149
    %v166 = vpack.c.b16 %v152, %v151
    %v167 = vpack.c.b16 %v154, %v153
    %v168 = vpack.c.b16 %v156, %v155
    %v169 = vpack.c.b16 %v158, %v157
    %v170 = vpack.c.b16 %v160, %v159
    %v171 = vpack.c.b16 %v162, %v161
    %v172 = vpack.c.b16 %v164, %v163
    %181 = vmatprep.subr.bf16.mxu0 0
    %182 = vmatpush1.bf16.msra.mxu0 %v165
    %183 = vmatprep.subr.bf16.mxu0 0
    %184 = vmatpush1.bf16.msra.mxu0 %v166
    %185 = vmatprep.subr.bf16.mxu0 0
    %186 = vmatpush1.bf16.msra.mxu0 %v167
    %187 = vmatprep.subr.bf16.mxu0 0
    %188 = vmatpush1.bf16.msra.mxu0 %v168
    %189 = vmatprep.subr.bf16.mxu0 0
    %190 = vmatpush1.bf16.msra.mxu0 %v169
    %191 = vmatprep.subr.bf16.mxu0 0
    %192 = vmatpush1.bf16.msra.mxu0 %v170
    %193 = vmatprep.subr.bf16.mxu0 0
    %194 = vmatpush1.bf16.msra.mxu0 %v171
    %195 = vmatprep.subr.bf16.mxu0 0
    %196 = vmatpush1.bf16.msra.mxu0 %v172
    %197 = vmatprep.subr.bf16.mxu0 0
    %198 = vmatpush1.bf16.msra.mxu0 0
    %199 = vmatprep.subr.bf16.mxu0 0
    %200 = vmatpush1.bf16.msra.mxu0 0
    %201 = vmatprep.subr.bf16.mxu0 0
    %202 = vmatpush1.bf16.msra.mxu0 0
    %203 = vmatprep.subr.bf16.mxu0 0
    %204 = vmatpush1.bf16.msra.mxu0 0
    %205 = vmatprep.subr.bf16.mxu0 0
    %206 = vmatpush1.bf16.msra.mxu0 0
    %207 = vmatprep.subr.bf16.mxu0 0
    %208 = vmatpush1.bf16.msra.mxu0 0
    %209 = vmatprep.subr.bf16.mxu0 0
    %210 = vmatpush1.bf16.msra.mxu0 0
    %211 = vmatprep.subr.bf16.mxu0 0
    %212 = vmatpush1.bf16.msra.mxu0 0
    %213 = vmatprep.mubr.bf16.mxu0 0
    %214 = vmatmul.mubr.bf16.gmra.mrb[0].mxu0 %v129
    %v215 = vpop.f32.mrb[0].mxu0
    %v216 = vadd.f32 %v117, %v215
    %v217 = vpop.f32.mrb[0].mxu0
    %v218 = vpop.f32.mrb[0].mxu0
    %v219 = vadd.f32 %v118, %v218
    %v220 = vpop.f32.mrb[0].mxu0
    %221 = vmatprep.mubr.bf16.mxu0 0
    %222 = vmatmul.mubr.bf16.gmra.mrb[0].mxu0 %v130
    %v223 = vpop.f32.mrb[0].mxu0
    %v224 = vadd.f32 %v119, %v223
    %v225 = vpop.f32.mrb[0].mxu0
    %v226 = vpop.f32.mrb[0].mxu0
    %v227 = vadd.f32 %v120, %v226
    %v228 = vpop.f32.mrb[0].mxu0
    %229 = vdwg.mxu0
    %vm230 = vcmp.eq.s32.totalorder %v76, 1
    %vm231 = vcmp.eq.s32.totalorder %v77, 1
    %vm232 = vcmp.eq.s32.totalorder %v78, 1
    %vm233 = vcmp.eq.s32.totalorder %v79, 1
    %v234 = vsel %vm230, 1, 0
    %v235 = vsel %vm231, 1, 0
    %v236 = vsel %vm232, 1, 0
    %v237 = vsel %vm233, 1, 0
    %v238 = vcvt.s32.f32 %v234
    %v239 = vcvt.s32.f32 %v235
    %v240 = vcvt.s32.f32 %v236
    %v241 = vcvt.s32.f32 %v237
    %243 = vset.pattern.permute.xlu0 0
    %244 = vperm.xlu0 %243, %v238
    %v245 = vpop.permute.xlu0 %244
    %248 = vset.pattern.permute.xlu0 0
    %249 = vperm.xlu0 %248, %v239
    %v250 = vpop.permute.xlu0 %249
    %253 = vset.pattern.permute.xlu0 0
    %254 = vperm.xlu0 %253, %v240
    %v255 = vpop.permute.xlu0 %254
    %258 = vset.pattern.permute.xlu0 0
    %259 = vperm.xlu0 %258, %v241
    %v260 = vpop.permute.xlu0 %259
    %v262 = vlaneseq
    %v263 = vshrl.u32 %v262, 7
    %v264 = vsub.s32 1, %v263
    %v265 = vrot.slane %v80, %v264
    %v266 = vmul.f32 %v245, %v265
    %v267 = vmul.f32 %v250, %v265
    %v268 = vmul.f32 %v255, %v265
    %v269 = vmul.f32 %v260, %v265
    %v270 = vadd.f32 %v216, %v266
    %v271 = vadd.f32 %v219, %v267
    %v272 = vadd.f32 %v224, %v268
    %v273 = vadd.f32 %v227, %v269
    %v274 = vld [vmem:[%s2] sm:$0xff]
    %v275 = vld [vmem:[%s2 + $0x8] sm:$0xff]
    %v276 = vld [vmem:[%s2 + $0x10] sm:$0xff]
    %v277 = vld [vmem:[%s2 + $0x18] sm:$0xff]
    %v278 = vadd.f32 %v270, %v274
    %v279 = vadd.f32 %v271, %v275
    %v280 = vadd.f32 %v272, %v276
    %v281 = vadd.f32 %v273, %v277
    %282 = vadd.xlane.f32.xlu0 %v278
    %v283 = vpop.xlane.xlu0 %282
    %284 = vadd.xlane.f32.xlu0 %v279
    %v285 = vpop.xlane.xlu0 %284
    %286 = vadd.xlane.f32.xlu0 %v280
    %v287 = vpop.xlane.xlu0 %286
    %288 = vadd.xlane.f32.xlu0 %v281
    %v289 = vpop.xlane.xlu0 %288
    %v290 = vmul.f32 %v283, 0.0078125
    %v291 = vmul.f32 %v285, 0.0078125
    %v292 = vmul.f32 %v287, 0.0078125
    %v293 = vmul.f32 %v289, 0.0078125
    %v294 = vmul.f32 %v278, %v278
    %v295 = vmul.f32 %v279, %v279
    %v296 = vmul.f32 %v280, %v280
    %v297 = vmul.f32 %v281, %v281
    %298 = vadd.xlane.f32.xlu0 %v294
    %v299 = vpop.xlane.xlu0 %298
    %300 = vadd.xlane.f32.xlu0 %v295
    %v301 = vpop.xlane.xlu0 %300
    %302 = vadd.xlane.f32.xlu0 %v296
    %v303 = vpop.xlane.xlu0 %302
    %304 = vadd.xlane.f32.xlu0 %v297
    %v305 = vpop.xlane.xlu0 %304
    %v306 = vmul.f32 %v299, 0.0078125
    %v307 = vmul.f32 %v301, 0.0078125
    %v308 = vmul.f32 %v303, 0.0078125
    %v309 = vmul.f32 %v305, 0.0078125
    %v310 = vmul.f32 %v290, %v290
    %v311 = vmul.f32 %v291, %v291
    %v312 = vmul.f32 %v292, %v292
    %v313 = vmul.f32 %v293, %v293
    %v314 = vsub.f32 %v306, %v310
    %v315 = vsub.f32 %v307, %v311
    %v316 = vsub.f32 %v308, %v312
    %v317 = vsub.f32 %v309, %v313
    %v318 = vmax.f32 %v314, 0.0
    %v319 = vmax.f32 %v315, 0.0
    %v320 = vmax.f32 %v316, 0.0
    %v321 = vmax.f32 %v317, 0.0
    %v322 = vsub.f32 %v278, %v290
    %v323 = vsub.f32 %v279, %v291
    %v324 = vsub.f32 %v280, %v292
    %v325 = vsub.f32 %v281, %v293
    %v326 = vadd.f32 %v318, 1e-12
    %v327 = vadd.f32 %v319, 1e-12
    %v328 = vadd.f32 %v320, 1e-12
    %v329 = vadd.f32 %v321, 1e-12
    %v330 = vrsqrt.pop %v326
    %v331 = vrsqrt.pop %v327
    %v332 = vrsqrt.pop %v328
    %v333 = vrsqrt.pop %v329
    %v334 = vmul.f32 %v322, %v330
    %v335 = vmul.f32 %v323, %v331
    %v336 = vmul.f32 %v324, %v332
    %v337 = vmul.f32 %v325, %v333
    %v338 = vld [vmem:[%s5] sm:$0x1]
    %v340 = vlaneseq
    %v341 = vshrl.u32 %v340, 7
    %v342 = vsub.s32 0, %v341
    %v343 = vrot.slane %v338, %v342
    %v345 = vmul.f32 %v334, %v343
    %v346 = vmul.f32 %v335, %v343
    %v347 = vmul.f32 %v336, %v343
    %v348 = vmul.f32 %v337, %v343
    %v349 = vld [vmem:[%s6] sm:$0x1]
    %v351 = vlaneseq
    %v352 = vshrl.u32 %v351, 7
    %v353 = vsub.s32 0, %v352
    %v354 = vrot.slane %v349, %v353
    %v356 = vadd.f32 %v345, %v354
    %v357 = vadd.f32 %v346, %v354
    %v358 = vadd.f32 %v347, %v354
    %v359 = vadd.f32 %v348, %v354
    %v360 = vpack.c.bf16 %v357, %v356
    %v361 = vpack.c.bf16 %v359, %v358
    %v364 = vunpack.c.l.b16 %v360
    %v365 = vunpack.c.h.b16 %v360
    %v366 = vunpack.c.l.b16 %v361
    %v367 = vunpack.c.h.b16 %v361
    %v368 = vpack.c.b16 %v364, %v364
    %v369 = vpack.c.b16 %v365, %v365
    %v370 = vpack.c.b16 %v366, %v366
    %v371 = vpack.c.b16 %v367, %v367
    %376 = vst [vmem:[#allocation7] sm:$0xf] %v368
    %377 = vst [vmem:[#allocation7 + $0x4] sm:$0xf] %v369
    %378 = vst [vmem:[#allocation7 + $0x8] sm:$0xf] %v370
    %379 = vst [vmem:[#allocation7 + $0xc] sm:$0xf] %v371
    // Predicated region
    $region38: #{tpu_custom_call.1} parent=1 // pred_check
      _
    $region39: #{tpu_custom_call.1} parent=1 // pred_check_branch
      %381 = sbr.rel (0) target = $region41
    $region40: #{tpu_custom_call.1} parent=1 // pred_region
      %s383 = ssub.s32 256, 256
      %384 = vsyncadd [#allocation4], %s383
      %s385 = sshll.u32 [#allocation7], 4
      %s386 = int_to_ptr.vmem [resolvable:$true] %s385
      %391 = dma.vmem_to_hbm [thread:$0]  %s386, 256, %s7, [#allocation4], 64, 64, 4
    $region41: #{tpu_custom_call.1} parent=1 // pred_fallthru
      _
    // Predicated region
    $region42: #{tpu_custom_call.1} parent=1 // pred_check
      _
    $region43: #{tpu_custom_call.1} parent=1 // pred_check_branch
      %393 = sbr.rel (0) target = $region45
    $region44: #{tpu_custom_call.1} parent=1 // pred_region
      %394 = dma.done [#allocation4], 256
    $region45: #{tpu_custom_call.1} parent=1 // pred_fallthru
      _
    %395 = vsyncpa [#allocation3], 1
    %396 = vsyncpa [#allocation6], 1
    %397 = vsyncpa [#allocation4], 1

// kernel: tpu_custom_call.1
$region0: #{tpu_custom_call.1}
  #allocation0 [shape = 'u32[]', space=smem, size = 0x4, offset = 0x4, fixed_abs, tag = 'smem constant byte address 0x4 - core index']
  #allocation1 [shape = 'u32[144,128]{1,0:T(1,128)}', space=vmem, size = 0x12000, scoped, tag = 'internal scratch']
  %s0 = inlined_call_operand.hbm [shape: bf16[32,128], index: 0, kind: input, shape index: {}]
  %s1 = inlined_call_operand.hbm [shape: bf16[128,128], index: 1, kind: input, shape index: {}]
  %s2 = inlined_call_operand.vmem [shape: f32[32,128], index: 2, kind: input, shape index: {}]
  %s3 = inlined_call_operand.vmem [shape: s32[32,1], index: 3, kind: input, shape index: {}]
  %s4 = inlined_call_operand.vmem [shape: f32[2,128], index: 4, kind: input, shape index: {}]
  %s5 = inlined_call_operand.vmem [shape: f32[1,128], index: 5, kind: input, shape index: {}]
  %s6 = inlined_call_operand.vmem [shape: f32[1,128], index: 6, kind: input, shape index: {}]
  %s7 = inlined_call_operand.hbm [shape: bf16[32,128], index: 7, kind: output, shape index: {}]
  %s8 = sld [smem:[#allocation0]]
  $region46: #{tpu_custom_call.1} parent=0
    _
  %s10 = ssub.s32 1, %s8
  %s11 = scalar_select 0, %s10, %s8
  $region1: #{tpu_custom_call.1} parent=0
    #allocation2 [shape = 'u8[8192]{0}', space=vmem, size = 0x2000, scoped, tag = 'input window, operand 0, single buffered']
    #allocation3 [shape = 's32[1]{0}', space=sflag, size = 0x4, scoped, tag = 'scoped memory for tpu_custom_call.1']
    #allocation4 [shape = 's32[1]{0}', space=sflag, size = 0x4, scoped, tag = 'scoped memory for tpu_custom_call.1']
    #allocation5 [shape = 'u8[32768]{0}', space=vmem, size = 0x8000, scoped, tag = 'input window, operand 1, single buffered']
    #allocation6 [shape = 's32[1]{0}', space=sflag, size = 0x4, scoped, tag = 'scoped memory for tpu_custom_call.1']
    #allocation7 [shape = 'u8[8192]{0}', space=vmem, size = 0x2000, scoped, tag = 'output window, operand 0, single buffered']
    %12 = vsyncpa [#allocation3], 0
    %13 = vsyncpa [#allocation6], 0
    %14 = vsyncpa [#allocation4], 0
    // Predicated region
    $region2: #{tpu_custom_call.1} parent=1 // pred_check
      _
    $region3: #{tpu_custom_call.1} parent=1 // pred_check_branch
      %16 = sbr.rel (0) target = $region5
    $region4: #{tpu_custom_call.1} parent=1 // pred_region
      %s18 = ssub.s32 256, 256
      %19 = vsyncadd [#allocation3], %s18
      %s20 = sshll.u32 [#allocation2], 4
      %s21 = int_to_ptr.vmem [resolvable:$true] %s20
      %26 = dma.hbm_to_vmem [thread:$0]  %s0, 256, %s21, [#allocation3], 64, 64, 4
    $region5: #{tpu_custom_call.1} parent=1 // pred_fallthru
      _
    // Predicated region
    $region6: #{tpu_custom_call.1} parent=1 // pred_check
      _
    $region7: #{tpu_custom_call.1} parent=1 // pred_check_branch
      %28 = sbr.rel (0) target = $region9
    $region8: #{tpu_custom_call.1} parent=1 // pred_region
      %s30 = ssub.s32 1024, 1024
      %31 = vsyncadd [#allocation6], %s30
      %s32 = sshll.u32 [#allocation5], 4
      %s33 = int_to_ptr.vmem [resolvable:$true] %s32
      %38 = dma.hbm_to_vmem [thread:$0]  %s1, 1024, %s33, [#allocation6], 64, 64, 4
    $region9: #{tpu_custom_call.1} parent=1 // pred_fallthru
      _
    // Predicated region
    $region10: #{tpu_custom_call.1} parent=1 // pred_check
      _
    $region11: #{tpu_custom_call.1} parent=1 // pred_check_branch
      %40 = sbr.rel (0) target = $region13
    $region12: #{tpu_custom_call.1} parent=1 // pred_region
      _
    $region13: #{tpu_custom_call.1} parent=1 // pred_fallthru
      _
    // Predicated region
    $region14: #{tpu_custom_call.1} parent=1 // pred_check
      _
    $region15: #{tpu_custom_call.1} parent=1 // pred_check_branch
      %42 = sbr.rel (0) target = $region17
    $region16: #{tpu_custom_call.1} parent=1 // pred_region
      _
    $region17: #{tpu_custom_call.1} parent=1 // pred_fallthru
      _
    // Predicated region
    $region18: #{tpu_custom_call.1} parent=1 // pred_check
      _
    $region19: #{tpu_custom_call.1} parent=1 // pred_check_branch
      %44 = sbr.rel (0) target = $region21
    $region20: #{tpu_custom_call.1} parent=1 // pred_region
      _
    $region21: #{tpu_custom_call.1} parent=1 // pred_fallthru
      _
    // Predicated region
    $region22: #{tpu_custom_call.1} parent=1 // pred_check
      _
    $region23: #{tpu_custom_call.1} parent=1 // pred_check_branch
      %46 = sbr.rel (0) target = $region25
    $region24: #{tpu_custom_call.1} parent=1 // pred_region
      _
    $region25: #{tpu_custom_call.1} parent=1 // pred_fallthru
      _
    // Predicated region
    $region26: #{tpu_custom_call.1} parent=1 // pred_check
      _
    $region27: #{tpu_custom_call.1} parent=1 // pred_check_branch
      %48 = sbr.rel (0) target = $region29
    $region28: #{tpu_custom_call.1} parent=1 // pred_region
      _
    $region29: #{tpu_custom_call.1} parent=1 // pred_fallthru
      _
    // Predicated region
    $region30: #{tpu_custom_call.1} parent=1 // pred_check
      _
    $region31: #{tpu_custom_call.1} parent=1 // pred_check_branch
      %50 = sbr.rel (0) target = $region33
    $region32: #{tpu_custom_call.1} parent=1 // pred_region
      %51 = dma.done [#allocation3], 256
    $region33: #{tpu_custom_call.1} parent=1 // pred_fallthru
      _
    // Predicated region
    $region34: #{tpu_custom_call.1} parent=1 // pred_check
      _
    $region35: #{tpu_custom_call.1} parent=1 // pred_check_branch
      %53 = sbr.rel (0) target = $region37
    $region36: #{tpu_custom_call.1} parent=1 // pred_region
      %54 = dma.done [#allocation6], 1024
    $region37: #{tpu_custom_call.1} parent=1 // pred_fallthru
      _
    %v56 = vld [vmem:[#allocation2] sm:$0xf]
    %v57 = vld [vmem:[#allocation2 + $0x4] sm:$0xf]
    %v58 = vld [vmem:[#allocation2 + $0x8] sm:$0xf]
    %v59 = vld [vmem:[#allocation2 + $0xc] sm:$0xf]
    %v60 = vld [vmem:[#allocation5] sm:$0xf]
    %v61 = vld [vmem:[#allocation5 + $0x4] sm:$0xf]
    %v62 = vld [vmem:[#allocation5 + $0x8] sm:$0xf]
    %v63 = vld [vmem:[#allocation5 + $0xc] sm:$0xf]
    %v64 = vld [vmem:[#allocation5 + $0x10] sm:$0xf]
    %v65 = vld [vmem:[#allocation5 + $0x14] sm:$0xf]
    %v66 = vld [vmem:[#allocation5 + $0x18] sm:$0xf]
    %v67 = vld [vmem:[#allocation5 + $0x1c] sm:$0xf]
    %v68 = vld [vmem:[#allocation5 + $0x20] sm:$0xf]
    %v69 = vld [vmem:[#allocation5 + $0x24] sm:$0xf]
    %v70 = vld [vmem:[#allocation5 + $0x28] sm:$0xf]
    %v71 = vld [vmem:[#allocation5 + $0x2c] sm:$0xf]
    %v72 = vld [vmem:[#allocation5 + $0x30] sm:$0xf]
    %v73 = vld [vmem:[#allocation5 + $0x34] sm:$0xf]
    %v74 = vld [vmem:[#allocation5 + $0x38] sm:$0xf]
    %v75 = vld [vmem:[#allocation5 + $0x3c] sm:$0xf]
    %v76 = vld [vmem:[%s3] sm:$0xff]
    %v77 = vld [vmem:[%s3 + $0x8] sm:$0xff]
    %v78 = vld [vmem:[%s3 + $0x10] sm:$0xff]
    %v79 = vld [vmem:[%s3 + $0x18] sm:$0xff]
    %v80 = vld [vmem:[%s4] sm:$0x3]
    %vm81 = vcmp.eq.s32.totalorder %v76, 0
    %vm82 = vcmp.eq.s32.totalorder %v77, 0
    %vm83 = vcmp.eq.s32.totalorder %v78, 0
    %vm84 = vcmp.eq.s32.totalorder %v79, 0
    %v85 = vsel %vm81, 1, 0
    %v86 = vsel %vm82, 1, 0
    %v87 = vsel %vm83, 1, 0
    %v88 = vsel %vm84, 1, 0
    %v89 = vcvt.s32.f32 %v85
    %v90 = vcvt.s32.f32 %v86
    %v91 = vcvt.s32.f32 %v87
    %v92 = vcvt.s32.f32 %v88
    %94 = vset.pattern.permute.xlu0 0
    %95 = vperm.xlu0 %94, %v89
    %v96 = vpop.permute.xlu0 %95
    %99 = vset.pattern.permute.xlu0 0
    %100 = vperm.xlu0 %99, %v90
    %v101 = vpop.permute.xlu0 %100
    %104 = vset.pattern.permute.xlu0 0
    %105 = vperm.xlu0 %104, %v91
    %v106 = vpop.permute.xlu0 %105
    %109 = vset.pattern.permute.xlu0 0
    %110 = vperm.xlu0 %109, %v92
    %v111 = vpop.permute.xlu0 %110
    %v113 = vlaneseq
    %v114 = vshrl.u32 %v113, 7
    %v115 = vsub.s32 0, %v114
    %v116 = vrot.slane %v80, %v115
    %v117 = vmul.f32 %v96, %v116
    %v118 = vmul.f32 %v101, %v116
    %v119 = vmul.f32 %v106, %v116
    %v120 = vmul.f32 %v111, %v116
    %v125 = vunpack.c.l.b16 %v56
    %v126 = vunpack.c.l.b16 %v57
    %v127 = vunpack.c.l.b16 %v58
    %v128 = vunpack.c.l.b16 %v59
    %v129 = vpack.c.b16 %v126, %v125
    %v130 = vpack.c.b16 %v128, %v127
    %v149 = vunpack.c.l.b16 %v60
    %v150 = vunpack.c.l.b16 %v61
    %v151 = vunpack.c.l.b16 %v62
    %v152 = vunpack.c.l.b16 %v63
    %v153 = vunpack.c.l.b16 %v64
    %v154 = vunpack.c.l.b16 %v65
    %v155 = vunpack.c.l.b16 %v66
    %v156 = vunpack.c.l.b16 %v67
    %v157 = vunpack.c.l.b16 %v68
    %v158 = vunpack.c.l.b16 %v69
    %v159 = vunpack.c.l.b16 %v70
    %v160 = vunpack.c.l.b16 %v71
    %v161 = vunpack.c.l.b16 %v72
    %v162 = vunpack.c.l.b16 %v73
    %v163 = vunpack.c.l.b16 %v74
    %v164 = vunpack.c.l.b16 %v75
    %v165 = vpack.c.b16 %v150, %v149
    %v166 = vpack.c.b16 %v152, %v151
    %v167 = vpack.c.b16 %v154, %v153
    %v168 = vpack.c.b16 %v156, %v155
    %v169 = vpack.c.b16 %v158, %v157
    %v170 = vpack.c.b16 %v160, %v159
    %v171 = vpack.c.b16 %v162, %v161
    %v172 = vpack.c.b16 %v164, %v163
    %181 = vmatprep.subr.bf16.mxu0 0
    %182 = vmatpush1.bf16.msra.mxu0 %v165
    %183 = vmatprep.subr.bf16.mxu0 0
    %184 = vmatpush1.bf16.msra.mxu0 %v166
    %185 = vmatprep.subr.bf16.mxu0 0
    %186 = vmatpush1.bf16.msra.mxu0 %v167
    %187 = vmatprep.subr.bf16.mxu0 0
    %188 = vmatpush1.bf16.msra.mxu0 %v168
    %189 = vmatprep.subr.bf16.mxu0 0
    %190 = vmatpush1.bf16.msra.mxu0 %v169
    %191 = vmatprep.subr.bf16.mxu0 0
    %192 = vmatpush1.bf16.msra.mxu0 %v170
    %193 = vmatprep.subr.bf16.mxu0 0
    %194 = vmatpush1.bf16.msra.mxu0 %v171
    %195 = vmatprep.subr.bf16.mxu0 0
    %196 = vmatpush1.bf16.msra.mxu0 %v172
    %197 = vmatprep.subr.bf16.mxu0 0
    %198 = vmatpush1.bf16.msra.mxu0 0
    %199 = vmatprep.subr.bf16.mxu0 0
    %200 = vmatpush1.bf16.msra.mxu0 0
    %201 = vmatprep.subr.bf16.mxu0 0
    %202 = vmatpush1.bf16.msra.mxu0 0
    %203 = vmatprep.subr.bf16.mxu0 0
    %204 = vmatpush1.bf16.msra.mxu0 0
    %205 = vmatprep.subr.bf16.mxu0 0
    %206 = vmatpush1.bf16.msra.mxu0 0
    %207 = vmatprep.subr.bf16.mxu0 0
    %208 = vmatpush1.bf16.msra.mxu0 0
    %209 = vmatprep.subr.bf16.mxu0 0
    %210 = vmatpush1.bf16.msra.mxu0 0
    %211 = vmatprep.subr.bf16.mxu0 0
    %212 = vmatpush1.bf16.msra.mxu0 0
    %213 = vmatprep.mubr.bf16.mxu0 0
    %214 = vmatmul.mubr.bf16.gmra.mrb[0].mxu0 %v129
    %v215 = vpop.f32.mrb[0].mxu0
    %v216 = vadd.f32 %v117, %v215
    %v217 = vpop.f32.mrb[0].mxu0
    %v218 = vpop.f32.mrb[0].mxu0
    %v219 = vadd.f32 %v118, %v218
    %v220 = vpop.f32.mrb[0].mxu0
    %221 = vmatprep.mubr.bf16.mxu0 0
    %222 = vmatmul.mubr.bf16.gmra.mrb[0].mxu0 %v130
    %v223 = vpop.f32.mrb[0].mxu0
    %v224 = vadd.f32 %v119, %v223
    %v225 = vpop.f32.mrb[0].mxu0
    %v226 = vpop.f32.mrb[0].mxu0
    %v227 = vadd.f32 %v120, %v226
    %v228 = vpop.f32.mrb[0].mxu0
    %229 = vdwg.mxu0
    %vm230 = vcmp.eq.s32.totalorder %v76, 1
    %vm231 = vcmp.eq.s32.totalorder %v77, 1
    %vm232 = vcmp.eq.s32.totalorder %v78, 1
    %vm233 = vcmp.eq.s32.totalorder %v79, 1
    %v234 = vsel %vm230, 1, 0
    %v235 = vsel %vm231, 1, 0
    %v236 = vsel %vm232, 1, 0
    %v237 = vsel %vm233, 1, 0
    %v238 = vcvt.s32.f32 %v234
    %v239 = vcvt.s32.f32 %v235
    %v240 = vcvt.s32.f32 %v236
    %v241 = vcvt.s32.f32 %v237
    %243 = vset.pattern.permute.xlu0 0
    %244 = vperm.xlu0 %243, %v238
    %v245 = vpop.permute.xlu0 %244
    %248 = vset.pattern.permute.xlu0 0
    %249 = vperm.xlu0 %248, %v239
    %v250 = vpop.permute.xlu0 %249
    %253 = vset.pattern.permute.xlu0 0
    %254 = vperm.xlu0 %253, %v240
    %v255 = vpop.permute.xlu0 %254
    %258 = vset.pattern.permute.xlu0 0
    %259 = vperm.xlu0 %258, %v241
    %v260 = vpop.permute.xlu0 %259
    %v262 = vlaneseq
    %v263 = vshrl.u32 %v262, 7
    %v264 = vsub.s32 1, %v263
    %v265 = vrot.slane %v80, %v264
    %v266 = vmul.f32 %v245, %v265
    %v267 = vmul.f32 %v250, %v265
    %v268 = vmul.f32 %v255, %v265
    %v269 = vmul.f32 %v260, %v265
    %v270 = vadd.f32 %v216, %v266
    %v271 = vadd.f32 %v219, %v267
    %v272 = vadd.f32 %v224, %v268
    %v273 = vadd.f32 %v227, %v269
    %v274 = vld [vmem:[%s2] sm:$0xff]
    %v275 = vld [vmem:[%s2 + $0x8] sm:$0xff]
    %v276 = vld [vmem:[%s2 + $0x10] sm:$0xff]
    %v277 = vld [vmem:[%s2 + $0x18] sm:$0xff]
    %v278 = vadd.f32 %v270, %v274
    %v279 = vadd.f32 %v271, %v275
    %v280 = vadd.f32 %v272, %v276
    %v281 = vadd.f32 %v273, %v277
    %282 = vadd.xlane.f32.xlu0 %v278
    %v283 = vpop.xlane.xlu0 %282
    %284 = vadd.xlane.f32.xlu0 %v279
    %v285 = vpop.xlane.xlu0 %284
    %286 = vadd.xlane.f32.xlu0 %v280
    %v287 = vpop.xlane.xlu0 %286
    %288 = vadd.xlane.f32.xlu0 %v281
    %v289 = vpop.xlane.xlu0 %288
    %v290 = vmul.f32 %v283, 0.0078125
    %v291 = vmul.f32 %v285, 0.0078125
    %v292 = vmul.f32 %v287, 0.0078125
    %v293 = vmul.f32 %v289, 0.0078125
    %v294 = vmul.f32 %v278, %v278
    %v295 = vmul.f32 %v279, %v279
    %v296 = vmul.f32 %v280, %v280
    %v297 = vmul.f32 %v281, %v281
    %298 = vadd.xlane.f32.xlu0 %v294
    %v299 = vpop.xlane.xlu0 %298
    %300 = vadd.xlane.f32.xlu0 %v295
    %v301 = vpop.xlane.xlu0 %300
    %302 = vadd.xlane.f32.xlu0 %v296
    %v303 = vpop.xlane.xlu0 %302
    %304 = vadd.xlane.f32.xlu0 %v297
    %v305 = vpop.xlane.xlu0 %304
    %v306 = vmul.f32 %v299, 0.0078125
    %v307 = vmul.f32 %v301, 0.0078125
    %v308 = vmul.f32 %v303, 0.0078125
    %v309 = vmul.f32 %v305, 0.0078125
    %v310 = vmul.f32 %v290, %v290
    %v311 = vmul.f32 %v291, %v291
    %v312 = vmul.f32 %v292, %v292
    %v313 = vmul.f32 %v293, %v293
    %v314 = vsub.f32 %v306, %v310
    %v315 = vsub.f32 %v307, %v311
    %v316 = vsub.f32 %v308, %v312
    %v317 = vsub.f32 %v309, %v313
    %v318 = vmax.f32 %v314, 0.0
    %v319 = vmax.f32 %v315, 0.0
    %v320 = vmax.f32 %v316, 0.0
    %v321 = vmax.f32 %v317, 0.0
    %v322 = vsub.f32 %v278, %v290
    %v323 = vsub.f32 %v279, %v291
    %v324 = vsub.f32 %v280, %v292
    %v325 = vsub.f32 %v281, %v293
    %v326 = vadd.f32 %v318, 1e-12
    %v327 = vadd.f32 %v319, 1e-12
    %v328 = vadd.f32 %v320, 1e-12
    %v329 = vadd.f32 %v321, 1e-12
    %v330 = vrsqrt.pop %v326
    %v331 = vrsqrt.pop %v327
    %v332 = vrsqrt.pop %v328
    %v333 = vrsqrt.pop %v329
    %v334 = vmul.f32 %v322, %v330
    %v335 = vmul.f32 %v323, %v331
    %v336 = vmul.f32 %v324, %v332
    %v337 = vmul.f32 %v325, %v333
    %v338 = vld [vmem:[%s5] sm:$0x1]
    %v340 = vlaneseq
    %v341 = vshrl.u32 %v340, 7
    %v342 = vsub.s32 0, %v341
    %v343 = vrot.slane %v338, %v342
    %v345 = vmul.f32 %v334, %v343
    %v346 = vmul.f32 %v335, %v343
    %v347 = vmul.f32 %v336, %v343
    %v348 = vmul.f32 %v337, %v343
    %v349 = vld [vmem:[%s6] sm:$0x1]
    %v351 = vlaneseq
    %v352 = vshrl.u32 %v351, 7
    %v353 = vsub.s32 0, %v352
    %v354 = vrot.slane %v349, %v353
    %v356 = vadd.f32 %v345, %v354
    %v357 = vadd.f32 %v346, %v354
    %v358 = vadd.f32 %v347, %v354
    %v359 = vadd.f32 %v348, %v354
    %v360 = vpack.c.bf16 %v357, %v356
    %v361 = vpack.c.bf16 %v359, %v358
    %v364 = vunpack.c.l.b16 %v360
    %v365 = vunpack.c.h.b16 %v360
    %v366 = vunpack.c.l.b16 %v361
    %v367 = vunpack.c.h.b16 %v361
    %v368 = vpack.c.b16 %v364, %v364
    %v369 = vpack.c.b16 %v365, %v365
    %v370 = vpack.c.b16 %v366, %v366
    %v371 = vpack.c.b16 %v367, %v367
    %376 = vst [vmem:[#allocation7] sm:$0xf] %v368
    %377 = vst [vmem:[#allocation7 + $0x4] sm:$0xf] %v369
    %378 = vst [vmem:[#allocation7 + $0x8] sm:$0xf] %v370
    %379 = vst [vmem:[#allocation7 + $0xc] sm:$0xf] %v371
    // Predicated region
    $region38: #{tpu_custom_call.1} parent=1 // pred_check
      _
    $region39: #{tpu_custom_call.1} parent=1 // pred_check_branch
      %381 = sbr.rel (0) target = $region41
    $region40: #{tpu_custom_call.1} parent=1 // pred_region
      %s383 = ssub.s32 256, 256
      %384 = vsyncadd [#allocation4], %s383
      %s385 = sshll.u32 [#allocation7], 4
      %s386 = int_to_ptr.vmem [resolvable:$true] %s385
      %391 = dma.vmem_to_hbm [thread:$0]  %s386, 256, %s7, [#allocation4], 64, 64, 4
    $region41: #{tpu_custom_call.1} parent=1 // pred_fallthru
      _
    // Predicated region
    $region42: #{tpu_custom_call.1} parent=1 // pred_check
      _
    $region43: #{tpu_custom_call.1} parent=1 // pred_check_branch
      %393 = sbr.rel (0) target = $region45
    $region44: #{tpu_custom_call.1} parent=1 // pred_region
      %394 = dma.done [#allocation4], 256
    $region45: #{tpu_custom_call.1} parent=1 // pred_fallthru
      _
    %395 = vsyncpa [#allocation3], 1
    %396 = vsyncpa [#allocation6], 1
    %397 = vsyncpa [#allocation4], 1

</llo_original>
